<compile_context>
chip_gen: v6e
topology: v6e:2x2x1
jax: 0.10.0
libtpu: 0.0.40
codegen_flags: <defaults>
</compile_context>

<pallas_src>
import jax
import jax.numpy as jnp
from jax.experimental import pallas as pl
from jax.experimental.pallas import tpu as pltpu


def _round_up(v: int, m: int) -> int:
    return (v + m - 1) // m * m


# ----------------------------------------------------------------------------- kernel
def _squash_linear_kernel(x_ref, t_ref, wl_ref, p_ref, o_ref):
    # x: (TM, dim_in) f32, wl: (dim_in, TN) bf16, p: (3, TN) f32 rows = [b_l, w_h, b_h],
    # t: (TM, 1) f32, o: (TM, TN) f32.
    a = x_ref[...].astype(jnp.bfloat16)                 # VPU cast -> native bf16 MXU pass
    lin = jnp.dot(a, wl_ref[...], preferred_element_type=jnp.float32)
    lin = lin + p_ref[0:1, :]                           # layer bias (f32)
    gate = jax.nn.sigmoid(t_ref[...] * p_ref[1:2, :] + p_ref[2:3, :])   # EUP slot
    o_ref[...] = (lin * gate).astype(o_ref.dtype)


# ----------------------------------------------------------------- one-time param prep
def prepare_squash_linear_params(w_layer, b_layer, w_hyper, b_hyper):
    """One-time parameter preparation (do NOT redo per training step).

    PyTorch nn.Linear layouts: w_layer (dim_out, dim_in), b_layer (dim_out,),
    w_hyper (dim_out, 1), b_hyper (dim_out,).
    Returns (wl_bf16 (dim_in, N_pad), params_f32 (3, N_pad), dim_out).
    """
    dim_out, dim_in = w_layer.shape
    n_pad = _round_up(dim_out, 128)                     # lane-dense output width
    wl = jnp.zeros((dim_in, n_pad), jnp.bfloat16)
    wl = wl.at[:, :dim_out].set(jnp.transpose(w_layer).astype(jnp.bfloat16))
    params = jnp.zeros((3, n_pad), jnp.float32)
    params = params.at[0, :dim_out].set(b_layer.astype(jnp.float32).reshape(-1))
    params = params.at[1, :dim_out].set(w_hyper.astype(jnp.float32).reshape(-1))
    params = params.at[2, :dim_out].set(b_hyper.astype(jnp.float32).reshape(-1))
    return wl, params, dim_out


# ------------------------------------------------------------------------ tile choice
def _vmem_capacity_bytes() -> int:
    try:
        cap = getattr(pltpu.get_tpu_info(), "vmem_capacity_bytes", None)
        if cap:
            return int(cap)
    except Exception:
        pass
    return 64 << 20        # conservative fallback (v7x per-TensorCore budget)


def _choose_tiles(B, dim_in, n_pad, vmem_cap):
    # N tile: bound the resident bf16 weight block (v7x only has 64 MiB VMEM).
    tn = n_pad
    weight_budget = min(24 << 20, vmem_cap // 3)
    while dim_in * tn * 2 > weight_budget and tn > 128:
        tn = _round_up(tn // 2, 128)

    # M tile: large for DMA amortization; aim for >= 2 row tiles so megacore can shard.
    tm_cap = 1024 if vmem_cap >= (96 << 20) else 512    # v5e/v6e can go bigger than v7x
    if B <= 16:
        tm = _round_up(max(B, 1), 8)
    else:
        tm = min(tm_cap, max(8, _round_up(pl.cdiv(B, 2), 8)))

    def footprint(tm_):
        return (2 * tm_ * dim_in * 4        # x tiles, double buffered, f32
                + 2 * tm_ * 4               # t tiles
                + 2 * tm_ * tn * 4          # out tiles, double buffered, f32
                + dim_in * tn * 2           # bf16 weights (single-buffer target)
                + 2 * 3 * tn * 4)           # param rows

    while tm > 8 and footprint(tm) > int(0.7 * vmem_cap):
        tm = max(8, _round_up(tm // 2, 8))
    return tm, tn, footprint(tm)


# --------------------------------------------------------------------------- the call
def _build_call(B, dim_in, n_pad, tm, tn, vmem_limit, cost, single_buffer_params):
    num_n = pl.cdiv(n_pad, tn)
    num_m = pl.cdiv(B, tm)
    if single_buffer_params and num_n == 1:
        # Grid-invariant blocks: one VMEM buffer is enough -> halves weight residency.
        wl_spec = pl.BlockSpec((dim_in, tn), lambda n, m: (0, n),
                               pipeline_mode=pl.Buffered(1))
        p_spec = pl.BlockSpec((3, tn), lambda n, m: (0, n),
                              pipeline_mode=pl.Buffered(1))
    else:
        wl_spec = pl.BlockSpec((dim_in, tn), lambda n, m: (0, n))
        p_spec = pl.BlockSpec((3, tn), lambda n, m: (0, n))

    return pl.pallas_call(
        _squash_linear_kernel,
        out_shape=jax.ShapeDtypeStruct((B, n_pad), jnp.float32),
        grid=(num_n, num_m),                            # m innermost: weights fetched once per n
        in_specs=[
            pl.BlockSpec((tm, dim_in), lambda n, m: (m, 0)),   # x row tile, pipelined
            pl.BlockSpec((tm, 1), lambda n, m: (m, 0)),        # t row tile
            wl_spec,                                           # bf16 weights (VMEM resident)
            p_spec,                                            # [b_layer; w_hyper; b_hyper]
        ],
        out_specs=pl.BlockSpec((tm, tn), lambda n, m: (m, n)),
        compiler_params=pltpu.CompilerParams(
            dimension_semantics=("parallel", "parallel"),
            vmem_limit_bytes=vmem_limit,
        ),
        cost_estimate=cost,
    )


def squash_linear_apply(t, x, wl_bf16, params, dim_out):
    """t: (B,), x: (B, dim_in); wl_bf16/params from prepare_squash_linear_params."""
    B, dim_in = x.shape
    n_pad = wl_bf16.shape[1]
    vmem_cap = _vmem_capacity_bytes()
    tm, tn, fp = _choose_tiles(B, dim_in, n_pad, vmem_cap)
    vmem_limit = int(min(int(0.9 * vmem_cap),
                         max(32 << 20, fp + dim_in * tn * 2 + (8 << 20))))

    cost = pl.CostEstimate(
        flops=2 * B * dim_in * n_pad + 4 * B * n_pad,
        transcendentals=B * n_pad,                                  # sigmoid
        bytes_accessed=4 * B * dim_in + 4 * B + 2 * dim_in * n_pad
                       + 12 * n_pad + 4 * B * n_pad,
    )

    t2 = t.reshape(-1, 1).astype(jnp.float32)                       # == t.view(-1, 1)
    args = (x, t2, wl_bf16, params)
    try:
        out = _build_call(B, dim_in, n_pad, tm, tn, vmem_limit, cost, True)(*args)
    except Exception:
        # Fallback for jax builds that reject pipeline_mode / Buffered(1).
        out = _build_call(B, dim_in, n_pad, tm, tn, vmem_limit, cost, False)(*args)
    return out if n_pad == dim_out else out[:, :dim_out]


def squash_linear(t, x, w_layer, b_layer, w_hyper, b_hyper):
    """Convenience wrapper matching SquashLinear.forward(t, x). For real training,
    call prepare_squash_linear_params once and reuse it across steps."""
    wl, params, dim_out = prepare_squash_linear_params(w_layer, b_layer, w_hyper, b_hyper)
    return squash_linear_apply(t, x, wl, params, dim_out)


def squash_linear_ref(t, x, w_layer, b_layer, w_hyper, b_hyper):
    lin = x @ w_layer.T + b_layer
    gate = jax.nn.sigmoid(t.reshape(-1, 1) @ w_hyper.T + b_hyper)
    return lin * gate


if __name__ == "__main__":
    key = jax.random.PRNGKey(0)
    B, dim_in, dim_out = 8, 32, 64

    k_x, k_t, k_wl, k_bl, k_wh, k_bh = jax.random.split(key, 6)
    x = jax.random.normal(k_x, (B, dim_in), dtype=jnp.float32)
    t = jax.random.uniform(k_t, (B,), dtype=jnp.float32)

    # Deterministic init mimicking nn.Linear's U(-1/sqrt(fan_in), 1/sqrt(fan_in)).
    lim_l = 1.0 / (dim_in ** 0.5)
    lim_h = 1.0  # fan_in = 1 for the hyper layer
    w_layer = jax.random.uniform(k_wl, (dim_out, dim_in), minval=-lim_l, maxval=lim_l)
    b_layer = jax.random.uniform(k_bl, (dim_out,), minval=-lim_l, maxval=lim_l)
    w_hyper = jax.random.uniform(k_wh, (dim_out, 1), minval=-lim_h, maxval=lim_h)
    b_hyper = jax.random.uniform(k_bh, (dim_out,), minval=-lim_h, maxval=lim_h)

    wl, params, dout = prepare_squash_linear_params(w_layer, b_layer, w_hyper, b_hyper)
    out = squash_linear_apply(t, x, wl, params, dout)
    out = jax.block_until_ready(out)

    ref = squash_linear_ref(t, x, w_layer, b_layer, w_hyper, b_hyper)
    assert out.shape == (B, dim_out)
    # bf16 MXU operands -> bf16-level tolerance vs. the pure-f32 reference.
    assert jnp.allclose(out, ref, atol=2e-2, rtol=2e-2), "mismatch vs reference"
    print("KERNEL_OK")
</pallas_src>

<mosaic_0001>
module attributes {stable_mosaic.version = 11 : i64} {
  func.func @_squash_linear_kernel(%arg0: i32, %arg1: i32, %arg2: memref<8x32xf32, #tpu.memory_space<vmem>>, %arg3: memref<8x1xf32, #tpu.memory_space<vmem>>, %arg4: memref<32x128xbf16, #tpu.memory_space<vmem>>, %arg5: memref<3x128xf32, #tpu.memory_space<vmem>>, %arg6: memref<8x128xf32, #tpu.memory_space<vmem>>) attributes {dimension_semantics = [#tpu.dimension_semantics<parallel>, #tpu.dimension_semantics<parallel>], iteration_bounds = array<i64: 1, 1>, scalar_prefetch = 0 : i64, scratch_operands = 0 : i64, tpu.core_type = #tpu.core_type<tc>, window_params = [{transform_indices = @transform_0, window_bounds = array<i64: 8, 32>}, {transform_indices = @transform_1, window_bounds = array<i64: 8, 1>}, {pipeline_mode = #tpu.pipeline_mode<synchronous>, transform_indices = @transform_2, window_bounds = array<i64: 32, 128>}, {pipeline_mode = #tpu.pipeline_mode<synchronous>, transform_indices = @transform_3, window_bounds = array<i64: 3, 128>}, {transform_indices = @transform_4, window_bounds = array<i64: 8, 128>}]} {
    %c0 = arith.constant 0 : index
    %c0_0 = arith.constant 0 : index
    %0 = vector.load %arg2[%c0, %c0_0] : memref<8x32xf32, #tpu.memory_space<vmem>>, vector<8x32xf32>
    %1 = arith.truncf %0 : vector<8x32xf32> to vector<8x32xbf16>
    %c0_1 = arith.constant 0 : index
    %c0_2 = arith.constant 0 : index
    %2 = vector.load %arg4[%c0_1, %c0_2] : memref<32x128xbf16, #tpu.memory_space<vmem>>, vector<32x128xbf16>
    %cst = arith.constant dense<0.000000e+00> : vector<8x128xf32>
    %3 = tpu.matmul %1, %2, %cst {dimension_numbers = #tpu.dot_dimension_numbers<[1], [0], [0], [1], [0, 0, 1, 1], [], []>} : vector<8x32xbf16>, vector<32x128xbf16>, vector<8x128xf32> -> vector<8x128xf32>
    %c0_3 = arith.constant 0 : index
    %c0_4 = arith.constant 0 : index
    %4 = vector.load %arg5[%c0_3, %c0_4] : memref<3x128xf32, #tpu.memory_space<vmem>>, vector<1x128xf32>
    %5 = vector.broadcast %4 : vector<1x128xf32> to vector<8x128xf32>
    %6 = arith.addf %3, %5 : vector<8x128xf32>
    %c0_5 = arith.constant 0 : index
    %c0_6 = arith.constant 0 : index
    %7 = vector.load %arg3[%c0_5, %c0_6] : memref<8x1xf32, #tpu.memory_space<vmem>>, vector<8x1xf32>
    %c1 = arith.constant 1 : index
    %c0_7 = arith.constant 0 : index
    %8 = vector.load %arg5[%c1, %c0_7] : memref<3x128xf32, #tpu.memory_space<vmem>>, vector<1x128xf32>
    %9 = vector.broadcast %7 : vector<8x1xf32> to vector<8x128xf32>
    %10 = vector.broadcast %8 : vector<1x128xf32> to vector<8x128xf32>
    %11 = arith.mulf %9, %10 : vector<8x128xf32>
    %c2 = arith.constant 2 : index
    %c0_8 = arith.constant 0 : index
    %12 = vector.load %arg5[%c2, %c0_8] : memref<3x128xf32, #tpu.memory_space<vmem>>, vector<1x128xf32>
    %13 = vector.broadcast %12 : vector<1x128xf32> to vector<8x128xf32>
    %14 = arith.addf %11, %13 : vector<8x128xf32>
    %15 = arith.negf %14 : vector<8x128xf32>
    %16 = math.exp %15 : vector<8x128xf32>
    %cst_9 = arith.constant 1.000000e+00 : f32
    %17 = vector.broadcast %cst_9 : f32 to vector<8x128xf32>
    %18 = arith.addf %17, %16 : vector<8x128xf32>
    %19 = arith.divf %17, %18 : vector<8x128xf32>
    %20 = arith.mulf %6, %19 : vector<8x128xf32>
    %c0_10 = arith.constant 0 : index
    %c0_11 = arith.constant 0 : index
    %21 = vector.load %arg6[%c0_10, %c0_11] : memref<8x128xf32, #tpu.memory_space<vmem>>, vector<8x128xf32>
    tpu.vector_store %arg6[%c0_10, %c0_11], %20 {strides = array<i32>} : memref<8x128xf32, #tpu.memory_space<vmem>>, vector<8x128xf32>,
    return
  }
  func.func @transform_0(%arg0: i32, %arg1: i32) -> (i32, i32) {
    %c0_i32 = arith.constant 0 : i32
    %c0_i32_0 = arith.constant 0 : i32
    return %arg1, %c0_i32 : i32, i32
  }
  func.func @transform_1(%arg0: i32, %arg1: i32) -> (i32, i32) {
    %c0_i32 = arith.constant 0 : i32
    %c0_i32_0 = arith.constant 0 : i32
    return %arg1, %c0_i32 : i32, i32
  }
  func.func @transform_2(%arg0: i32, %arg1: i32) -> (i32, i32) {
    %c0_i32 = arith.constant 0 : i32
    %c0_i32_0 = arith.constant 0 : i32
    return %c0_i32, %arg0 : i32, i32
  }
  func.func @transform_3(%arg0: i32, %arg1: i32) -> (i32, i32) {
    %c0_i32 = arith.constant 0 : i32
    %c0_i32_0 = arith.constant 0 : i32
    return %c0_i32, %arg0 : i32, i32
  }
  func.func @transform_4(%arg0: i32, %arg1: i32) -> (i32, i32) {
    %c0_i32 = arith.constant 0 : i32
    return %arg1, %arg0 : i32, i32
  }
}

module attributes {stable_mosaic.version = 11 : i64} {
  func.func @_squash_linear_kernel(%arg0: i32, %arg1: i32, %arg2: memref<8x32xf32, #tpu.memory_space<vmem>>, %arg3: memref<8x1xf32, #tpu.memory_space<vmem>>, %arg4: memref<32x128xbf16, #tpu.memory_space<vmem>>, %arg5: memref<3x128xf32, #tpu.memory_space<vmem>>, %arg6: memref<8x128xf32, #tpu.memory_space<vmem>>) attributes {dimension_semantics = [#tpu.dimension_semantics<parallel>, #tpu.dimension_semantics<parallel>], iteration_bounds = array<i64: 1, 1>, scalar_prefetch = 0 : i64, scratch_operands = 0 : i64, tpu.core_type = #tpu.core_type<tc>, window_params = [{transform_indices = @transform_0, window_bounds = array<i64: 8, 32>}, {transform_indices = @transform_1, window_bounds = array<i64: 8, 1>}, {transform_indices = @transform_2, window_bounds = array<i64: 32, 128>}, {transform_indices = @transform_3, window_bounds = array<i64: 3, 128>}, {transform_indices = @transform_4, window_bounds = array<i64: 8, 128>}]} {
    %c0 = arith.constant 0 : index
    %c0_0 = arith.constant 0 : index
    %0 = vector.load %arg2[%c0, %c0_0] : memref<8x32xf32, #tpu.memory_space<vmem>>, vector<8x32xf32>
    %1 = arith.truncf %0 : vector<8x32xf32> to vector<8x32xbf16>
    %c0_1 = arith.constant 0 : index
    %c0_2 = arith.constant 0 : index
    %2 = vector.load %arg4[%c0_1, %c0_2] : memref<32x128xbf16, #tpu.memory_space<vmem>>, vector<32x128xbf16>
    %cst = arith.constant dense<0.000000e+00> : vector<8x128xf32>
    %3 = tpu.matmul %1, %2, %cst {dimension_numbers = #tpu.dot_dimension_numbers<[1], [0], [0], [1], [0, 0, 1, 1], [], []>} : vector<8x32xbf16>, vector<32x128xbf16>, vector<8x128xf32> -> vector<8x128xf32>
    %c0_3 = arith.constant 0 : index
    %c0_4 = arith.constant 0 : index
    %4 = vector.load %arg5[%c0_3, %c0_4] : memref<3x128xf32, #tpu.memory_space<vmem>>, vector<1x128xf32>
    %5 = vector.broadcast %4 : vector<1x128xf32> to vector<8x128xf32>
    %6 = arith.addf %3, %5 : vector<8x128xf32>
    %c0_5 = arith.constant 0 : index
    %c0_6 = arith.constant 0 : index
    %7 = vector.load %arg3[%c0_5, %c0_6] : memref<8x1xf32, #tpu.memory_space<vmem>>, vector<8x1xf32>
    %c1 = arith.constant 1 : index
    %c0_7 = arith.constant 0 : index
    %8 = vector.load %arg5[%c1, %c0_7] : memref<3x128xf32, #tpu.memory_space<vmem>>, vector<1x128xf32>
    %9 = vector.broadcast %7 : vector<8x1xf32> to vector<8x128xf32>
    %10 = vector.broadcast %8 : vector<1x128xf32> to vector<8x128xf32>
    %11 = arith.mulf %9, %10 : vector<8x128xf32>
    %c2 = arith.constant 2 : index
    %c0_8 = arith.constant 0 : index
    %12 = vector.load %arg5[%c2, %c0_8] : memref<3x128xf32, #tpu.memory_space<vmem>>, vector<1x128xf32>
    %13 = vector.broadcast %12 : vector<1x128xf32> to vector<8x128xf32>
    %14 = arith.addf %11, %13 : vector<8x128xf32>
    %15 = arith.negf %14 : vector<8x128xf32>
    %16 = math.exp %15 : vector<8x128xf32>
    %cst_9 = arith.constant 1.000000e+00 : f32
    %17 = vector.broadcast %cst_9 : f32 to vector<8x128xf32>
    %18 = arith.addf %17, %16 : vector<8x128xf32>
    %19 = arith.divf %17, %18 : vector<8x128xf32>
    %20 = arith.mulf %6, %19 : vector<8x128xf32>
    %c0_10 = arith.constant 0 : index
    %c0_11 = arith.constant 0 : index
    %21 = vector.load %arg6[%c0_10, %c0_11] : memref<8x128xf32, #tpu.memory_space<vmem>>, vector<8x128xf32>
    tpu.vector_store %arg6[%c0_10, %c0_11], %20 {strides = array<i32>} : memref<8x128xf32, #tpu.memory_space<vmem>>, vector<8x128xf32>,
    return
  }
  func.func @transform_0(%arg0: i32, %arg1: i32) -> (i32, i32) {
    %c0_i32 = arith.constant 0 : i32
    %c0_i32_0 = arith.constant 0 : i32
    return %arg1, %c0_i32 : i32, i32
  }
  func.func @transform_1(%arg0: i32, %arg1: i32) -> (i32, i32) {
    %c0_i32 = arith.constant 0 : i32
    %c0_i32_0 = arith.constant 0 : i32
    return %arg1, %c0_i32 : i32, i32
  }
  func.func @transform_2(%arg0: i32, %arg1: i32) -> (i32, i32) {
    %c0_i32 = arith.constant 0 : i32
    %c0_i32_0 = arith.constant 0 : i32
    return %c0_i32, %arg0 : i32, i32
  }
  func.func @transform_3(%arg0: i32, %arg1: i32) -> (i32, i32) {
    %c0_i32 = arith.constant 0 : i32
    %c0_i32_0 = arith.constant 0 : i32
    return %c0_i32, %arg0 : i32, i32
  }
  func.func @transform_4(%arg0: i32, %arg1: i32) -> (i32, i32) {
    %c0_i32 = arith.constant 0 : i32
    return %arg1, %arg0 : i32, i32
  }
}

</mosaic_0001>

<llo_original>
// kernel: tpu_custom_call.1
$region0: #{tpu_custom_call.1}
  #allocation0 [shape = 'u32[]', space=smem, size = 0x4, offset = 0x4, fixed_abs, tag = 'smem constant byte address 0x4 - core index']
  #allocation1 [shape = 'u32[144,128]{1,0:T(1,128)}', space=vmem, size = 0x12000, scoped, tag = 'internal scratch']
  %s0 = inlined_call_operand.vmem [shape: f32[8,32], index: 0, kind: input, shape index: {}]
  %s1 = inlined_call_operand.vmem [shape: f32[8,1], index: 1, kind: input, shape index: {}]
  %s2 = inlined_call_operand.hbm [shape: bf16[32,128], index: 2, kind: input, shape index: {}]
  %s3 = inlined_call_operand.vmem [shape: f32[3,128], index: 3, kind: input, shape index: {}]
  %s4 = inlined_call_operand.hbm [shape: f32[8,128], index: 4, kind: output, shape index: {}]
  %s5 = sld [smem:[#allocation0]]
  $region30: #{tpu_custom_call.1} parent=0
    _
  %s7 = ssub.s32 1, %s5
  %s8 = scalar_select 0, %s7, %s5
  $region1: #{tpu_custom_call.1} parent=0
    #allocation2 [shape = 'u8[8192]{0}', space=vmem, size = 0x2000, scoped, tag = 'input window, operand 2, single buffered']
    #allocation3 [shape = 's32[1]{0}', space=sflag, size = 0x4, scoped, tag = 'scoped memory for tpu_custom_call.1']
    #allocation4 [shape = 's32[1]{0}', space=sflag, size = 0x4, scoped, tag = 'scoped memory for tpu_custom_call.1']
    #allocation5 [shape = 'u8[4096]{0}', space=vmem, size = 0x1000, scoped, tag = 'output window, operand 0, single buffered']
    %9 = vsyncpa [#allocation3], 0
    %10 = vsyncpa [#allocation4], 0
    // Predicated region
    $region2: #{tpu_custom_call.1} parent=1 // pred_check
      _
    $region3: #{tpu_custom_call.1} parent=1 // pred_check_branch
      %12 = sbr.rel (0) target = $region5
    $region4: #{tpu_custom_call.1} parent=1 // pred_region
      _
    $region5: #{tpu_custom_call.1} parent=1 // pred_fallthru
      _
    // Predicated region
    $region6: #{tpu_custom_call.1} parent=1 // pred_check
      _
    $region7: #{tpu_custom_call.1} parent=1 // pred_check_branch
      %14 = sbr.rel (0) target = $region9
    $region8: #{tpu_custom_call.1} parent=1 // pred_region
      _
    $region9: #{tpu_custom_call.1} parent=1 // pred_fallthru
      _
    // Predicated region
    $region10: #{tpu_custom_call.1} parent=1 // pred_check
      _
    $region11: #{tpu_custom_call.1} parent=1 // pred_check_branch
      %16 = sbr.rel (0) target = $region13
    $region12: #{tpu_custom_call.1} parent=1 // pred_region
      %s18 = ssub.s32 256, 256
      %19 = vsyncadd [#allocation3], %s18
      %s20 = sshll.u32 [#allocation2], 4
      %s21 = int_to_ptr.vmem [resolvable:$true] %s20
      %26 = dma.hbm_to_vmem [thread:$0]  %s2, 256, %s21, [#allocation3], 64, 64, 4
    $region13: #{tpu_custom_call.1} parent=1 // pred_fallthru
      _
    // Predicated region
    $region14: #{tpu_custom_call.1} parent=1 // pred_check
      _
    $region15: #{tpu_custom_call.1} parent=1 // pred_check_branch
      %28 = sbr.rel (0) target = $region17
    $region16: #{tpu_custom_call.1} parent=1 // pred_region
      _
    $region17: #{tpu_custom_call.1} parent=1 // pred_fallthru
      _
    // Predicated region
    $region18: #{tpu_custom_call.1} parent=1 // pred_check
      _
    $region19: #{tpu_custom_call.1} parent=1 // pred_check_branch
      %30 = sbr.rel (0) target = $region21
    $region20: #{tpu_custom_call.1} parent=1 // pred_region
      %31 = dma.done [#allocation3], 256
    $region21: #{tpu_custom_call.1} parent=1 // pred_fallthru
      _
    %v33 = vld [vmem:[%s0] sm:$0xff]
    %v34 = vpack.c.bf16 %v33, %v33
    %v35 = vld [vmem:[#allocation2] sm:$0xf]
    %v36 = vld [vmem:[#allocation2 + $0x4] sm:$0xf]
    %v37 = vld [vmem:[#allocation2 + $0x8] sm:$0xf]
    %v38 = vld [vmem:[#allocation2 + $0xc] sm:$0xf]
    %v39 = vld [vmem:[%s3] sm:$0x1]
    %v40 = vlaneseq
    %v41 = vshrl.u32 %v40, 7
    %v42 = vsub.s32 0, %v41
    %v43 = vrot.slane %v39, %v42
    %v48 = vunpack.c.l.b16 %v35
    %v49 = vunpack.c.l.b16 %v36
    %v50 = vunpack.c.l.b16 %v37
    %v51 = vunpack.c.l.b16 %v38
    %v52 = vpack.c.b16 %v49, %v48
    %v53 = vpack.c.b16 %v51, %v50
    %vm56 = vcmask 261120
    %v58 = vsel %vm56, %v34, 0
    %60 = vmatprep.subr.bf16.mxu0 0
    %61 = vmatpush1.bf16.msra.mxu0 0
    %62 = vmatprep.subr.bf16.mxu0 0
    %63 = vmatpush1.bf16.msra.mxu0 0
    %64 = vmatprep.subr.bf16.mxu0 0
    %65 = vmatpush1.bf16.msra.mxu0 0
    %66 = vmatprep.subr.bf16.mxu0 0
    %67 = vmatpush1.bf16.msra.mxu0 0
    %68 = vmatprep.subr.bf16.mxu0 0
    %69 = vmatpush1.bf16.msra.mxu0 0
    %70 = vmatprep.subr.bf16.mxu0 0
    %71 = vmatpush1.bf16.msra.mxu0 0
    %72 = vmatprep.subr.bf16.mxu0 0
    %73 = vmatpush1.bf16.msra.mxu0 %v53
    %74 = vmatprep.subr.bf16.mxu0 0
    %75 = vmatpush1.bf16.msra.mxu0 %v52
    %76 = vmatprep.subr.bf16.mxu0 0
    %77 = vmatpush2.bf16.msra.mxu0 0
    %78 = vmatprep.subr.bf16.mxu0 0
    %79 = vmatpush2.bf16.msra.mxu0 0
    %80 = vmatprep.subr.bf16.mxu0 0
    %81 = vmatpush2.bf16.msra.mxu0 0
    %82 = vmatprep.subr.bf16.mxu0 0
    %83 = vmatpush2.bf16.msra.mxu0 0
    %84 = vmatprep.subr.bf16.mxu0 0
    %85 = vmatpush2.bf16.msra.mxu0 0
    %86 = vmatprep.subr.bf16.mxu0 0
    %87 = vmatpush2.bf16.msra.mxu0 0
    %88 = vmatprep.subr.bf16.mxu0 0
    %89 = vmatpush2.bf16.msra.mxu0 0
    %90 = vmatprep.subr.bf16.mxu0 0
    %91 = vmatpush2.bf16.msra.mxu0 0
    %92 = vmatprep.mubr.bf16.mxu0 0
    %93 = vmatmul.mubr.bf16.gmra.mxu0 %v58
    %v94 = vpop.f32.mrf.mxu0
    %v95 = vadd.f32 %v43, %v94
    %v96 = vpop.f32.mrf.mxu0
    %v97 = vpop.f32.mrf.mxu0
    %v98 = vpop.f32.mrf.mxu0
    %99 = vdwg.mxu0
    %v100 = vld [vmem:[%s1] sm:$0xff]
    %v101 = vld [vmem:[%s3 + $0x1] sm:$0x1]
    %103 = vset.pattern.permute.xlu0 0
    %104 = vperm.xlu0 %103, %v100
    %v105 = vpop.permute.xlu0 %104
    %v107 = vlaneseq
    %v108 = vshrl.u32 %v107, 7
    %v109 = vsub.s32 0, %v108
    %v110 = vrot.slane %v101, %v109
    %v111 = vmul.f32 %v105, %v110
    %v112 = vld [vmem:[%s3 + $0x2] sm:$0x1]
    %v113 = vlaneseq
    %v114 = vshrl.u32 %v113, 7
    %v115 = vsub.s32 0, %v114
    %v116 = vrot.slane %v112, %v115
    %v117 = vadd.f32 %v111, %v116
    %v118 = vxor.u32 %v117, 2147483648
    %v119 = vmul.f32 %v118, 1.442695
    %v120 = vpow.pop %v119
    %v121 = vadd.f32 %v120, 1.0
    %v122 = vrcp.pop %v121
    %v123 = vmul.f32 1.0, %v122
    %v124 = vmul.f32 %v95, %v123
    %125 = vst [vmem:[#allocation5] sm:$0xff] %v124
    // Predicated region
    $region22: #{tpu_custom_call.1} parent=1 // pred_check
      _
    $region23: #{tpu_custom_call.1} parent=1 // pred_check_branch
      %127 = sbr.rel (0) target = $region25
    $region24: #{tpu_custom_call.1} parent=1 // pred_region
      %s129 = ssub.s32 128, 128
      %130 = vsyncadd [#allocation4], %s129
      %s132 = sshll.u32 [#allocation5], 4
      %s133 = int_to_ptr.vmem [resolvable:$true] %s132
      %135 = dma.vmem_to_hbm [thread:$0]  %s133, 128, %s4, [#allocation4]
    $region25: #{tpu_custom_call.1} parent=1 // pred_fallthru
      _
    // Predicated region
    $region26: #{tpu_custom_call.1} parent=1 // pred_check
      _
    $region27: #{tpu_custom_call.1} parent=1 // pred_check_branch
      %137 = sbr.rel (0) target = $region29
    $region28: #{tpu_custom_call.1} parent=1 // pred_region
      %138 = dma.done [#allocation4], 128
    $region29: #{tpu_custom_call.1} parent=1 // pred_fallthru
      _
    %139 = vsyncpa [#allocation3], 1
    %140 = vsyncpa [#allocation4], 1

// kernel: tpu_custom_call.1
$region0: #{tpu_custom_call.1}
  #allocation0 [shape = 'u32[]', space=smem, size = 0x4, offset = 0x4, fixed_abs, tag = 'smem constant byte address 0x4 - core index']
  #allocation1 [shape = 'u32[144,128]{1,0:T(1,128)}', space=vmem, size = 0x12000, scoped, tag = 'internal scratch']
  %s0 = inlined_call_operand.vmem [shape: f32[8,32], index: 0, kind: input, shape index: {}]
  %s1 = inlined_call_operand.vmem [shape: f32[8,1], index: 1, kind: input, shape index: {}]
  %s2 = inlined_call_operand.hbm [shape: bf16[32,128], index: 2, kind: input, shape index: {}]
  %s3 = inlined_call_operand.vmem [shape: f32[3,128], index: 3, kind: input, shape index: {}]
  %s4 = inlined_call_operand.hbm [shape: f32[8,128], index: 4, kind: output, shape index: {}]
  %s5 = sld [smem:[#allocation0]]
  $region30: #{tpu_custom_call.1} parent=0
    _
  %s7 = ssub.s32 1, %s5
  %s8 = scalar_select 0, %s7, %s5
  $region1: #{tpu_custom_call.1} parent=0
    #allocation2 [shape = 'u8[8192]{0}', space=vmem, size = 0x2000, scoped, tag = 'input window, operand 2, single buffered']
    #allocation3 [shape = 's32[1]{0}', space=sflag, size = 0x4, scoped, tag = 'scoped memory for tpu_custom_call.1']
    #allocation4 [shape = 's32[1]{0}', space=sflag, size = 0x4, scoped, tag = 'scoped memory for tpu_custom_call.1']
    #allocation5 [shape = 'u8[4096]{0}', space=vmem, size = 0x1000, scoped, tag = 'output window, operand 0, single buffered']
    %9 = vsyncpa [#allocation3], 0
    %10 = vsyncpa [#allocation4], 0
    // Predicated region
    $region2: #{tpu_custom_call.1} parent=1 // pred_check
      _
    $region3: #{tpu_custom_call.1} parent=1 // pred_check_branch
      %12 = sbr.rel (0) target = $region5
    $region4: #{tpu_custom_call.1} parent=1 // pred_region
      _
    $region5: #{tpu_custom_call.1} parent=1 // pred_fallthru
      _
    // Predicated region
    $region6: #{tpu_custom_call.1} parent=1 // pred_check
      _
    $region7: #{tpu_custom_call.1} parent=1 // pred_check_branch
      %14 = sbr.rel (0) target = $region9
    $region8: #{tpu_custom_call.1} parent=1 // pred_region
      _
    $region9: #{tpu_custom_call.1} parent=1 // pred_fallthru
      _
    // Predicated region
    $region10: #{tpu_custom_call.1} parent=1 // pred_check
      _
    $region11: #{tpu_custom_call.1} parent=1 // pred_check_branch
      %16 = sbr.rel (0) target = $region13
    $region12: #{tpu_custom_call.1} parent=1 // pred_region
      %s18 = ssub.s32 256, 256
      %19 = vsyncadd [#allocation3], %s18
      %s20 = sshll.u32 [#allocation2], 4
      %s21 = int_to_ptr.vmem [resolvable:$true] %s20
      %26 = dma.hbm_to_vmem [thread:$0]  %s2, 256, %s21, [#allocation3], 64, 64, 4
    $region13: #{tpu_custom_call.1} parent=1 // pred_fallthru
      _
    // Predicated region
    $region14: #{tpu_custom_call.1} parent=1 // pred_check
      _
    $region15: #{tpu_custom_call.1} parent=1 // pred_check_branch
      %28 = sbr.rel (0) target = $region17
    $region16: #{tpu_custom_call.1} parent=1 // pred_region
      _
    $region17: #{tpu_custom_call.1} parent=1 // pred_fallthru
      _
    // Predicated region
    $region18: #{tpu_custom_call.1} parent=1 // pred_check
      _
    $region19: #{tpu_custom_call.1} parent=1 // pred_check_branch
      %30 = sbr.rel (0) target = $region21
    $region20: #{tpu_custom_call.1} parent=1 // pred_region
      %31 = dma.done [#allocation3], 256
    $region21: #{tpu_custom_call.1} parent=1 // pred_fallthru
      _
    %v33 = vld [vmem:[%s0] sm:$0xff]
    %v34 = vpack.c.bf16 %v33, %v33
    %v35 = vld [vmem:[#allocation2] sm:$0xf]
    %v36 = vld [vmem:[#allocation2 + $0x4] sm:$0xf]
    %v37 = vld [vmem:[#allocation2 + $0x8] sm:$0xf]
    %v38 = vld [vmem:[#allocation2 + $0xc] sm:$0xf]
    %v39 = vld [vmem:[%s3] sm:$0x1]
    %v40 = vlaneseq
    %v41 = vshrl.u32 %v40, 7
    %v42 = vsub.s32 0, %v41
    %v43 = vrot.slane %v39, %v42
    %v48 = vunpack.c.l.b16 %v35
    %v49 = vunpack.c.l.b16 %v36
    %v50 = vunpack.c.l.b16 %v37
    %v51 = vunpack.c.l.b16 %v38
    %v52 = vpack.c.b16 %v49, %v48
    %v53 = vpack.c.b16 %v51, %v50
    %vm56 = vcmask 261120
    %v58 = vsel %vm56, %v34, 0
    %60 = vmatprep.subr.bf16.mxu0 0
    %61 = vmatpush1.bf16.msra.mxu0 0
    %62 = vmatprep.subr.bf16.mxu0 0
    %63 = vmatpush1.bf16.msra.mxu0 0
    %64 = vmatprep.subr.bf16.mxu0 0
    %65 = vmatpush1.bf16.msra.mxu0 0
    %66 = vmatprep.subr.bf16.mxu0 0
    %67 = vmatpush1.bf16.msra.mxu0 0
    %68 = vmatprep.subr.bf16.mxu0 0
    %69 = vmatpush1.bf16.msra.mxu0 0
    %70 = vmatprep.subr.bf16.mxu0 0
    %71 = vmatpush1.bf16.msra.mxu0 0
    %72 = vmatprep.subr.bf16.mxu0 0
    %73 = vmatpush1.bf16.msra.mxu0 %v53
    %74 = vmatprep.subr.bf16.mxu0 0
    %75 = vmatpush1.bf16.msra.mxu0 %v52
    %76 = vmatprep.subr.bf16.mxu0 0
    %77 = vmatpush2.bf16.msra.mxu0 0
    %78 = vmatprep.subr.bf16.mxu0 0
    %79 = vmatpush2.bf16.msra.mxu0 0
    %80 = vmatprep.subr.bf16.mxu0 0
    %81 = vmatpush2.bf16.msra.mxu0 0
    %82 = vmatprep.subr.bf16.mxu0 0
    %83 = vmatpush2.bf16.msra.mxu0 0
    %84 = vmatprep.subr.bf16.mxu0 0
    %85 = vmatpush2.bf16.msra.mxu0 0
    %86 = vmatprep.subr.bf16.mxu0 0
    %87 = vmatpush2.bf16.msra.mxu0 0
    %88 = vmatprep.subr.bf16.mxu0 0
    %89 = vmatpush2.bf16.msra.mxu0 0
    %90 = vmatprep.subr.bf16.mxu0 0
    %91 = vmatpush2.bf16.msra.mxu0 0
    %92 = vmatprep.mubr.bf16.mxu0 0
    %93 = vmatmul.mubr.bf16.gmra.mxu0 %v58
    %v94 = vpop.f32.mrf.mxu0
    %v95 = vadd.f32 %v43, %v94
    %v96 = vpop.f32.mrf.mxu0
    %v97 = vpop.f32.mrf.mxu0
    %v98 = vpop.f32.mrf.mxu0
    %99 = vdwg.mxu0
    %v100 = vld [vmem:[%s1] sm:$0xff]
    %v101 = vld [vmem:[%s3 + $0x1] sm:$0x1]
    %103 = vset.pattern.permute.xlu0 0
    %104 = vperm.xlu0 %103, %v100
    %v105 = vpop.permute.xlu0 %104
    %v107 = vlaneseq
    %v108 = vshrl.u32 %v107, 7
    %v109 = vsub.s32 0, %v108
    %v110 = vrot.slane %v101, %v109
    %v111 = vmul.f32 %v105, %v110
    %v112 = vld [vmem:[%s3 + $0x2] sm:$0x1]
    %v113 = vlaneseq
    %v114 = vshrl.u32 %v113, 7
    %v115 = vsub.s32 0, %v114
    %v116 = vrot.slane %v112, %v115
    %v117 = vadd.f32 %v111, %v116
    %v118 = vxor.u32 %v117, 2147483648
    %v119 = vmul.f32 %v118, 1.442695
    %v120 = vpow.pop %v119
    %v121 = vadd.f32 %v120, 1.0
    %v122 = vrcp.pop %v121
    %v123 = vmul.f32 1.0, %v122
    %v124 = vmul.f32 %v95, %v123
    %125 = vst [vmem:[#allocation5] sm:$0xff] %v124
    // Predicated region
    $region22: #{tpu_custom_call.1} parent=1 // pred_check
      _
    $region23: #{tpu_custom_call.1} parent=1 // pred_check_branch
      %127 = sbr.rel (0) target = $region25
    $region24: #{tpu_custom_call.1} parent=1 // pred_region
      %s129 = ssub.s32 128, 128
      %130 = vsyncadd [#allocation4], %s129
      %s132 = sshll.u32 [#allocation5], 4
      %s133 = int_to_ptr.vmem [resolvable:$true] %s132
      %135 = dma.vmem_to_hbm [thread:$0]  %s133, 128, %s4, [#allocation4]
    $region25: #{tpu_custom_call.1} parent=1 // pred_fallthru
      _
    // Predicated region
    $region26: #{tpu_custom_call.1} parent=1 // pred_check
      _
    $region27: #{tpu_custom_call.1} parent=1 // pred_check_branch
      %137 = sbr.rel (0) target = $region29
    $region28: #{tpu_custom_call.1} parent=1 // pred_region
      %138 = dma.done [#allocation4], 128
    $region29: #{tpu_custom_call.1} parent=1 // pred_fallthru
      _
    %139 = vsyncpa [#allocation3], 1
    %140 = vsyncpa [#allocation4], 1

</llo_original>
